<compile_context>
chip_gen: v7x
topology: tpu7x:2x2x1
jax: 0.10.0
libtpu: 0.0.40
codegen_flags: <defaults>
</compile_context>

<pallas_src>
import functools

import jax
import jax.numpy as jnp
from jax import lax
from jax.experimental import pallas as pl
from jax.experimental.pallas import tpu as pltpu


# ---------------------------------------------------------------------------
# Shared attention + output-projection body.
# MXU operands are bf16; softmax and accumulation are f32.
# ---------------------------------------------------------------------------
def _attention_and_out_proj(q, k, v, wo, *, nheads, dim_head, out_dim):
    tq = q.shape[0]
    q_bf = q.astype(jnp.bfloat16)
    k_bf = k.astype(jnp.bfloat16)
    v_bf = v.astype(jnp.bfloat16)

    acc = jnp.zeros((tq, out_dim), jnp.float32)
    for h in range(nheads):                      # static, unrolled head loop
        lo = h * dim_head
        hi = lo + dim_head
        qh = q_bf[:, lo:hi]                      # (tq, dk)
        kh = k_bf[:, lo:hi]                      # (kl, dk)
        vh = v_bf[:, lo:hi]                      # (kl, dk)

        # scores: contract last axis of both operands (no explicit transpose)
        s = lax.dot_general(qh, kh, (((1,), (1,)), ((), ())),
                            preferred_element_type=jnp.float32)     # (tq, kl)
        # scale already folded into the Q weight columns at pack time
        s_max = jnp.max(s, axis=-1, keepdims=True)
        p = jnp.exp(s - s_max)
        denom = jnp.sum(p, axis=-1, keepdims=True)
        p = p * pl.reciprocal(denom, approx=True)                   # EUP, not VALU divide

        oh = jnp.dot(p.astype(jnp.bfloat16), vh,
                     preferred_element_type=jnp.float32)            # (tq, dk)
        # fold this head straight into the output projection (no concat)
        acc = acc + jnp.dot(oh.astype(jnp.bfloat16), wo[lo:hi, :],
                            preferred_element_type=jnp.float32)     # (tq, dim)
    return acc


# ---------------------------------------------------------------------------
# Kernel A: whole sequence in one tile -> fully fused QKV projection.
# ---------------------------------------------------------------------------
def _mha_fused_kernel(x_ref, wqkv_ref, bqkv_ref, wo_ref, bo_ref, o_ref,
                      *, nheads, dim_head, hidden):
    x = x_ref[0].astype(jnp.bfloat16)                                # (ql, dim)
    qkv = jnp.dot(x, wqkv_ref[...],
                  preferred_element_type=jnp.float32) + bqkv_ref[...]  # (ql, 3h)
    q = qkv[:, :hidden]
    k = qkv[:, hidden:2 * hidden]
    v = qkv[:, 2 * hidden:]
    acc = _attention_and_out_proj(q, k, v, wo_ref[...], nheads=nheads,
                                  dim_head=dim_head, out_dim=o_ref.shape[2])
    o_ref[0] = (acc + bo_ref[...]).astype(o_ref.dtype)


# ---------------------------------------------------------------------------
# Kernel B: q sequence tiled -> Q projected per tile, K/V from full sequence.
# ---------------------------------------------------------------------------
def _mha_qtiled_kernel(xq_ref, xkv_ref, wqkv_ref, bqkv_ref, wo_ref, bo_ref,
                       o_ref, *, nheads, dim_head, hidden):
    xq = xq_ref[0].astype(jnp.bfloat16)                              # (tq, dim)
    xkv = xkv_ref[0].astype(jnp.bfloat16)                            # (kl, dim)
    w = wqkv_ref[...]                                                # (dim, 3h) bf16
    b = bqkv_ref[...]                                                # (1, 3h) f32

    q = jnp.dot(xq, w[:, :hidden],
                preferred_element_type=jnp.float32) + b[:, :hidden]  # (tq, h)
    kv = jnp.dot(xkv, w[:, hidden:],
                 preferred_element_type=jnp.float32) + b[:, hidden:]  # (kl, 2h)
    k = kv[:, :hidden]
    v = kv[:, hidden:]
    acc = _attention_and_out_proj(q, k, v, wo_ref[...], nheads=nheads,
                                  dim_head=dim_head, out_dim=o_ref.shape[2])
    o_ref[0] = (acc + bo_ref[...]).astype(o_ref.dtype)


def _choose_q_tile(ql):
    if ql <= 512:
        return ql
    for t in (512, 256, 128, 64, 32, 16, 8):
        if ql % t == 0:
            return t
    return ql


def mha_forward(q, packed_params, *, nheads, dim_head, q_block=None):
    """Self-attention (kv=None path, dropout=0). q: (bs, ql, dim) float32."""
    bs, ql, dim = q.shape
    wqkv_t, bqkv, wo_t, bo = packed_params

    tq = _choose_q_tile(ql) if q_block is None else q_block
    assert ql % tq == 0 and (tq % 8 == 0 or tq == ql), "bad q tile"
    n_q_tiles = ql // tq

    if n_q_tiles == 1:
        grid = (bs,)
        kernel = functools.partial(_mha_fused_kernel, nheads=nheads,
                                   dim_head=dim_head, hidden=nheads * dim_head)
        full = lambda shape: pl.BlockSpec(shape, lambda b: (0, 0))
        in_specs = [
            pl.BlockSpec((1, ql, dim), lambda b: (b, 0, 0)),           # x
            full(wqkv_t.shape), full(bqkv.shape),
            full(wo_t.shape), full(bo.shape),
        ]
        out_specs = pl.BlockSpec((1, ql, dim), lambda b: (b, 0, 0))
        args = (q, wqkv_t, bqkv, wo_t, bo)
        dims = ("parallel",)
    else:
        grid = (bs, n_q_tiles)
        kernel = functools.partial(_mha_qtiled_kernel, nheads=nheads,
                                   dim_head=dim_head, hidden=nheads * dim_head)
        full = lambda shape: pl.BlockSpec(shape, lambda b, i: (0, 0))
        in_specs = [
            pl.BlockSpec((1, tq, dim), lambda b, i: (b, i, 0)),        # q tile
            pl.BlockSpec((1, ql, dim), lambda b, i: (b, 0, 0)),        # full seq (K/V)
            full(wqkv_t.shape), full(bqkv.shape),
            full(wo_t.shape), full(bo.shape),
        ]
        out_specs = pl.BlockSpec((1, tq, dim), lambda b, i: (b, i, 0))
        args = (q, q, wqkv_t, bqkv, wo_t, bo)
        dims = ("parallel", "parallel")

    return pl.pallas_call(
        kernel,
        out_shape=jax.ShapeDtypeStruct((bs, ql, dim), q.dtype),
        grid_spec=pltpu.PrefetchScalarGridSpec(
            num_scalar_prefetch=0,
            grid=grid,
            in_specs=in_specs,
            out_specs=out_specs,
        ),
        compiler_params=pltpu.CompilerParams(
            dimension_semantics=dims,
            # explicit scoped-VMEM cap with headroom for v7x's 64 MiB VMEM
            vmem_limit_bytes=48 * 1024 * 1024,
        ),
    )(*args)


# ---------------------------------------------------------------------------
# Params: raw (PyTorch layout) init + one-time host-side packing.
# ---------------------------------------------------------------------------
def _xavier_uniform(key, out_features, in_features):
    bound = (6.0 / (in_features + out_features)) ** 0.5
    return jax.random.uniform(key, (out_features, in_features),
                              minval=-bound, maxval=bound, dtype=jnp.float32)


def init_params(key, dim, nheads, dim_head):
    """Raw PyTorch-layout params: (wq, bq, wk, bk, wv, bv, wo, bo)."""
    hidden = nheads * dim_head
    k1, k2, k3 = jax.random.split(key, 3)
    wq = _xavier_uniform(k1, hidden, dim)          # to_q.weight
    wkv = _xavier_uniform(k2, 2 * hidden, dim)     # to_kv.weight
    wo = _xavier_uniform(k3, dim, hidden)          # Ow.weight
    wk, wv = wkv[:hidden], wkv[hidden:]
    zeros = lambda n: jnp.zeros((n,), jnp.float32)
    return (wq, zeros(hidden), wk, zeros(hidden), wv, zeros(hidden),
            wo, zeros(dim))


def pack_params(raw_params, *, nheads, dim_head):
    """One-time host-side packing: fuse QKV into (dim, 3*hidden), fold the
    attention scale into the Q columns, transpose to [in, out], cast matmul
    weights to bf16 (biases stay f32)."""
    wq, bq, wk, bk, wv, bv, wo, bo = raw_params
    scale = float(dim_head) ** (-0.5)
    wqkv_t = jnp.concatenate([wq.T * scale, wk.T, wv.T],
                             axis=1).astype(jnp.bfloat16)            # (dim, 3h)
    bqkv = jnp.concatenate([bq * scale, bk, bv])[None, :].astype(jnp.float32)
    return (wqkv_t, bqkv, wo.T.astype(jnp.bfloat16),
            bo[None, :].astype(jnp.float32))


# ---------------------------------------------------------------------------
# Pure-JAX f32 reference mirroring the PyTorch forward (kv=None, dropout=0).
# ---------------------------------------------------------------------------
def mha_reference(x, raw_params, *, nheads, dim_head):
    wq, bq, wk, bk, wv, bv, wo, bo = raw_params
    scale = float(dim_head) ** (-0.5)
    Q = x @ wq.T + bq
    K = x @ wk.T + bk
    V = x @ wv.T + bv
    b, s, _ = Q.shape
    Qh = Q.reshape(b, s, nheads, dim_head)
    Kh = K.reshape(b, s, nheads, dim_head)
    Vh = V.reshape(b, s, nheads, dim_head)
    scores = jnp.einsum('nqhd,nkhd->nhqk', Qh, Kh) * scale
    attn = jax.nn.softmax(scores, axis=-1)
    out = jnp.einsum('nhql,nlhd->nqhd', attn, Vh).reshape(b, s, -1)
    return out @ wo.T + bo


if __name__ == "__main__":
    bs, ql, dim = 2, 8, 32
    nheads, dim_head = 4, 8          # hidden_dim = 32
    # TODO(synk): cross-attention (kv != None), return_atten_score and nonzero
    # dropout paths are not implemented (dropout=0.0 -> identity here).

    key = jax.random.PRNGKey(0)
    kx, kp = jax.random.split(key)
    x = jax.random.normal(kx, (bs, ql, dim), dtype=jnp.float32)
    raw = init_params(kp, dim, nheads, dim_head)
    packed = pack_params(raw, nheads=nheads, dim_head=dim_head)

    # Path 1: fused QKV projection (single q tile).
    out = mha_forward(x, packed, nheads=nheads, dim_head=dim_head)
    out = jax.block_until_ready(out)
    ref = mha_reference(x, raw, nheads=nheads, dim_head=dim_head)
    assert out.shape == (bs, ql, dim)
    assert jnp.allclose(out, ref, atol=5e-2, rtol=5e-2), "fused path mismatch"

    # Path 2: q-sequence tiled grid (bs, n_q_tiles) — exercised with ql=16, tq=8.
    x2 = jax.random.normal(jax.random.PRNGKey(1), (bs, 16, dim), dtype=jnp.float32)
    out2 = mha_forward(x2, packed, nheads=nheads, dim_head=dim_head, q_block=8)
    out2 = jax.block_until_ready(out2)
    ref2 = mha_reference(x2, raw, nheads=nheads, dim_head=dim_head)
    assert jnp.allclose(out2, ref2, atol=5e-2, rtol=5e-2), "tiled path mismatch"

    print("KERNEL_OK")
</pallas_src>

<mosaic_0001>
module attributes {stable_mosaic.version = 11 : i64} {
  func.func @_mha_fused_kernel(%arg0: i32, %arg1: memref<1x8x32xf32, #tpu.memory_space<vmem>>, %arg2: memref<32x96xbf16, #tpu.memory_space<vmem>>, %arg3: memref<1x96xf32, #tpu.memory_space<vmem>>, %arg4: memref<32x32xbf16, #tpu.memory_space<vmem>>, %arg5: memref<1x32xf32, #tpu.memory_space<vmem>>, %arg6: memref<1x8x32xf32, #tpu.memory_space<vmem>>) attributes {dimension_semantics = [#tpu.dimension_semantics<parallel>], iteration_bounds = array<i64: 2>, scalar_prefetch = 0 : i64, scratch_operands = 0 : i64, tpu.core_type = #tpu.core_type<tc>, window_params = [{transform_indices = @transform_0, window_bounds = array<i64: 1, 8, 32>}, {pipeline_mode = #tpu.pipeline_mode<synchronous>, transform_indices = @transform_1, window_bounds = array<i64: 32, 96>}, {pipeline_mode = #tpu.pipeline_mode<synchronous>, transform_indices = @transform_2, window_bounds = array<i64: 1, 96>}, {pipeline_mode = #tpu.pipeline_mode<synchronous>, transform_indices = @transform_3, window_bounds = array<i64: 32, 32>}, {pipeline_mode = #tpu.pipeline_mode<synchronous>, transform_indices = @transform_4, window_bounds = array<i64: 1, 32>}, {transform_indices = @transform_5, window_bounds = array<i64: 1, 8, 32>}]} {
    %c0 = arith.constant 0 : index
    %c0_0 = arith.constant 0 : index
    %c0_1 = arith.constant 0 : index
    %0 = vector.load %arg1[%c0, %c0_0, %c0_1] : memref<1x8x32xf32, #tpu.memory_space<vmem>>, vector<1x8x32xf32>
    %1 = vector.shape_cast %0 : vector<1x8x32xf32> to vector<8x32xf32>
    %2 = arith.truncf %1 : vector<8x32xf32> to vector<8x32xbf16>
    %c0_2 = arith.constant 0 : index
    %c0_3 = arith.constant 0 : index
    %3 = vector.load %arg2[%c0_2, %c0_3] : memref<32x96xbf16, #tpu.memory_space<vmem>>, vector<32x96xbf16>
    %cst = arith.constant dense<0.000000e+00> : vector<8x96xf32>
    %4 = tpu.matmul %2, %3, %cst {dimension_numbers = #tpu.dot_dimension_numbers<[1], [0], [0], [1], [0, 0, 1, 1], [], []>} : vector<8x32xbf16>, vector<32x96xbf16>, vector<8x96xf32> -> vector<8x96xf32>
    %c0_4 = arith.constant 0 : index
    %c0_5 = arith.constant 0 : index
    %5 = vector.load %arg3[%c0_4, %c0_5] : memref<1x96xf32, #tpu.memory_space<vmem>>, vector<1x96xf32>
    %6 = vector.broadcast %5 : vector<1x96xf32> to vector<8x96xf32>
    %7 = arith.addf %4, %6 : vector<8x96xf32>
    %8 = vector.extract_strided_slice %7 {offsets = [0, 0], sizes = [8, 32], strides = [1, 1]} : vector<8x96xf32> to vector<8x32xf32>
    %9 = vector.extract_strided_slice %7 {offsets = [0, 32], sizes = [8, 32], strides = [1, 1]} : vector<8x96xf32> to vector<8x32xf32>
    %10 = vector.extract_strided_slice %7 {offsets = [0, 64], sizes = [8, 32], strides = [1, 1]} : vector<8x96xf32> to vector<8x32xf32>
    %c0_6 = arith.constant 0 : index
    %c0_7 = arith.constant 0 : index
    %11 = vector.load %arg4[%c0_6, %c0_7] : memref<32x32xbf16, #tpu.memory_space<vmem>>, vector<32x32xbf16>
    %12 = arith.truncf %8 : vector<8x32xf32> to vector<8x32xbf16>
    %13 = arith.truncf %9 : vector<8x32xf32> to vector<8x32xbf16>
    %14 = arith.truncf %10 : vector<8x32xf32> to vector<8x32xbf16>
    %cst_8 = arith.constant 0.000000e+00 : f32
    %15 = vector.broadcast %cst_8 : f32 to vector<8x32xf32>
    %16 = vector.extract_strided_slice %12 {offsets = [0, 0], sizes = [8, 8], strides = [1, 1]} : vector<8x32xbf16> to vector<8x8xbf16>
    %17 = vector.extract_strided_slice %13 {offsets = [0, 0], sizes = [8, 8], strides = [1, 1]} : vector<8x32xbf16> to vector<8x8xbf16>
    %18 = vector.extract_strided_slice %14 {offsets = [0, 0], sizes = [8, 8], strides = [1, 1]} : vector<8x32xbf16> to vector<8x8xbf16>
    %cst_9 = arith.constant dense<0.000000e+00> : vector<8x8xf32>
    %19 = tpu.matmul %16, %17, %cst_9 {dimension_numbers = #tpu.dot_dimension_numbers<[1], [1], [0], [0], [0, 0, 1, 0], [], []>} : vector<8x8xbf16>, vector<8x8xbf16>, vector<8x8xf32> -> vector<8x8xf32>
    %cst_10 = arith.constant dense<0xFF800000> : vector<8xf32>
    %20 = vector.multi_reduction <maximumf>, %19, %cst_10 [1] : vector<8x8xf32> to vector<8xf32>
    %21 = vector.shape_cast %20 : vector<8xf32> to vector<8x1xf32>
    %22 = vector.broadcast %21 : vector<8x1xf32> to vector<8x8xf32>
    %23 = arith.subf %19, %22 : vector<8x8xf32>
    %24 = math.exp %23 : vector<8x8xf32>
    %cst_11 = arith.constant dense<0.000000e+00> : vector<8xf32>
    %25 = vector.multi_reduction <add>, %24, %cst_11 [1] : vector<8x8xf32> to vector<8xf32>
    %26 = vector.shape_cast %25 : vector<8xf32> to vector<8x1xf32>
    %27 = tpu.reciprocal %26 {approx = true} : vector<8x1xf32> -> vector<8x1xf32>
    %28 = vector.broadcast %27 : vector<8x1xf32> to vector<8x8xf32>
    %29 = arith.mulf %24, %28 : vector<8x8xf32>
    %30 = arith.truncf %29 : vector<8x8xf32> to vector<8x8xbf16>
    %cst_12 = arith.constant dense<0.000000e+00> : vector<8x8xf32>
    %31 = tpu.matmul %30, %18, %cst_12 {dimension_numbers = #tpu.dot_dimension_numbers<[1], [0], [0], [1], [0, 0, 1, 1], [], []>} : vector<8x8xbf16>, vector<8x8xbf16>, vector<8x8xf32> -> vector<8x8xf32>
    %32 = arith.truncf %31 : vector<8x8xf32> to vector<8x8xbf16>
    %33 = vector.extract_strided_slice %11 {offsets = [0, 0], sizes = [8, 32], strides = [1, 1]} : vector<32x32xbf16> to vector<8x32xbf16>
    %cst_13 = arith.constant dense<0.000000e+00> : vector<8x32xf32>
    %34 = tpu.matmul %32, %33, %cst_13 {dimension_numbers = #tpu.dot_dimension_numbers<[1], [0], [0], [1], [0, 0, 1, 1], [], []>} : vector<8x8xbf16>, vector<8x32xbf16>, vector<8x32xf32> -> vector<8x32xf32>
    %35 = arith.addf %15, %34 : vector<8x32xf32>
    %36 = vector.extract_strided_slice %12 {offsets = [0, 8], sizes = [8, 8], strides = [1, 1]} : vector<8x32xbf16> to vector<8x8xbf16>
    %37 = vector.extract_strided_slice %13 {offsets = [0, 8], sizes = [8, 8], strides = [1, 1]} : vector<8x32xbf16> to vector<8x8xbf16>
    %38 = vector.extract_strided_slice %14 {offsets = [0, 8], sizes = [8, 8], strides = [1, 1]} : vector<8x32xbf16> to vector<8x8xbf16>
    %cst_14 = arith.constant dense<0.000000e+00> : vector<8x8xf32>
    %39 = tpu.matmul %36, %37, %cst_14 {dimension_numbers = #tpu.dot_dimension_numbers<[1], [1], [0], [0], [0, 0, 1, 0], [], []>} : vector<8x8xbf16>, vector<8x8xbf16>, vector<8x8xf32> -> vector<8x8xf32>
    %cst_15 = arith.constant dense<0xFF800000> : vector<8xf32>
    %40 = vector.multi_reduction <maximumf>, %39, %cst_15 [1] : vector<8x8xf32> to vector<8xf32>
    %41 = vector.shape_cast %40 : vector<8xf32> to vector<8x1xf32>
    %42 = vector.broadcast %41 : vector<8x1xf32> to vector<8x8xf32>
    %43 = arith.subf %39, %42 : vector<8x8xf32>
    %44 = math.exp %43 : vector<8x8xf32>
    %cst_16 = arith.constant dense<0.000000e+00> : vector<8xf32>
    %45 = vector.multi_reduction <add>, %44, %cst_16 [1] : vector<8x8xf32> to vector<8xf32>
    %46 = vector.shape_cast %45 : vector<8xf32> to vector<8x1xf32>
    %47 = tpu.reciprocal %46 {approx = true} : vector<8x1xf32> -> vector<8x1xf32>
    %48 = vector.broadcast %47 : vector<8x1xf32> to vector<8x8xf32>
    %49 = arith.mulf %44, %48 : vector<8x8xf32>
    %50 = arith.truncf %49 : vector<8x8xf32> to vector<8x8xbf16>
    %cst_17 = arith.constant dense<0.000000e+00> : vector<8x8xf32>
    %51 = tpu.matmul %50, %38, %cst_17 {dimension_numbers = #tpu.dot_dimension_numbers<[1], [0], [0], [1], [0, 0, 1, 1], [], []>} : vector<8x8xbf16>, vector<8x8xbf16>, vector<8x8xf32> -> vector<8x8xf32>
    %52 = arith.truncf %51 : vector<8x8xf32> to vector<8x8xbf16>
    %53 = vector.extract_strided_slice %11 {offsets = [8, 0], sizes = [8, 32], strides = [1, 1]} : vector<32x32xbf16> to vector<8x32xbf16>
    %cst_18 = arith.constant dense<0.000000e+00> : vector<8x32xf32>
    %54 = tpu.matmul %52, %53, %cst_18 {dimension_numbers = #tpu.dot_dimension_numbers<[1], [0], [0], [1], [0, 0, 1, 1], [], []>} : vector<8x8xbf16>, vector<8x32xbf16>, vector<8x32xf32> -> vector<8x32xf32>
    %55 = arith.addf %35, %54 : vector<8x32xf32>
    %56 = vector.extract_strided_slice %12 {offsets = [0, 16], sizes = [8, 8], strides = [1, 1]} : vector<8x32xbf16> to vector<8x8xbf16>
    %57 = vector.extract_strided_slice %13 {offsets = [0, 16], sizes = [8, 8], strides = [1, 1]} : vector<8x32xbf16> to vector<8x8xbf16>
    %58 = vector.extract_strided_slice %14 {offsets = [0, 16], sizes = [8, 8], strides = [1, 1]} : vector<8x32xbf16> to vector<8x8xbf16>
    %cst_19 = arith.constant dense<0.000000e+00> : vector<8x8xf32>
    %59 = tpu.matmul %56, %57, %cst_19 {dimension_numbers = #tpu.dot_dimension_numbers<[1], [1], [0], [0], [0, 0, 1, 0], [], []>} : vector<8x8xbf16>, vector<8x8xbf16>, vector<8x8xf32> -> vector<8x8xf32>
    %cst_20 = arith.constant dense<0xFF800000> : vector<8xf32>
    %60 = vector.multi_reduction <maximumf>, %59, %cst_20 [1] : vector<8x8xf32> to vector<8xf32>
    %61 = vector.shape_cast %60 : vector<8xf32> to vector<8x1xf32>
    %62 = vector.broadcast %61 : vector<8x1xf32> to vector<8x8xf32>
    %63 = arith.subf %59, %62 : vector<8x8xf32>
    %64 = math.exp %63 : vector<8x8xf32>
    %cst_21 = arith.constant dense<0.000000e+00> : vector<8xf32>
    %65 = vector.multi_reduction <add>, %64, %cst_21 [1] : vector<8x8xf32> to vector<8xf32>
    %66 = vector.shape_cast %65 : vector<8xf32> to vector<8x1xf32>
    %67 = tpu.reciprocal %66 {approx = true} : vector<8x1xf32> -> vector<8x1xf32>
    %68 = vector.broadcast %67 : vector<8x1xf32> to vector<8x8xf32>
    %69 = arith.mulf %64, %68 : vector<8x8xf32>
    %70 = arith.truncf %69 : vector<8x8xf32> to vector<8x8xbf16>
    %cst_22 = arith.constant dense<0.000000e+00> : vector<8x8xf32>
    %71 = tpu.matmul %70, %58, %cst_22 {dimension_numbers = #tpu.dot_dimension_numbers<[1], [0], [0], [1], [0, 0, 1, 1], [], []>} : vector<8x8xbf16>, vector<8x8xbf16>, vector<8x8xf32> -> vector<8x8xf32>
    %72 = arith.truncf %71 : vector<8x8xf32> to vector<8x8xbf16>
    %73 = vector.extract_strided_slice %11 {offsets = [16, 0], sizes = [8, 32], strides = [1, 1]} : vector<32x32xbf16> to vector<8x32xbf16>
    %cst_23 = arith.constant dense<0.000000e+00> : vector<8x32xf32>
    %74 = tpu.matmul %72, %73, %cst_23 {dimension_numbers = #tpu.dot_dimension_numbers<[1], [0], [0], [1], [0, 0, 1, 1], [], []>} : vector<8x8xbf16>, vector<8x32xbf16>, vector<8x32xf32> -> vector<8x32xf32>
    %75 = arith.addf %55, %74 : vector<8x32xf32>
    %76 = vector.extract_strided_slice %12 {offsets = [0, 24], sizes = [8, 8], strides = [1, 1]} : vector<8x32xbf16> to vector<8x8xbf16>
    %77 = vector.extract_strided_slice %13 {offsets = [0, 24], sizes = [8, 8], strides = [1, 1]} : vector<8x32xbf16> to vector<8x8xbf16>
    %78 = vector.extract_strided_slice %14 {offsets = [0, 24], sizes = [8, 8], strides = [1, 1]} : vector<8x32xbf16> to vector<8x8xbf16>
    %cst_24 = arith.constant dense<0.000000e+00> : vector<8x8xf32>
    %79 = tpu.matmul %76, %77, %cst_24 {dimension_numbers = #tpu.dot_dimension_numbers<[1], [1], [0], [0], [0, 0, 1, 0], [], []>} : vector<8x8xbf16>, vector<8x8xbf16>, vector<8x8xf32> -> vector<8x8xf32>
    %cst_25 = arith.constant dense<0xFF800000> : vector<8xf32>
    %80 = vector.multi_reduction <maximumf>, %79, %cst_25 [1] : vector<8x8xf32> to vector<8xf32>
    %81 = vector.shape_cast %80 : vector<8xf32> to vector<8x1xf32>
    %82 = vector.broadcast %81 : vector<8x1xf32> to vector<8x8xf32>
    %83 = arith.subf %79, %82 : vector<8x8xf32>
    %84 = math.exp %83 : vector<8x8xf32>
    %cst_26 = arith.constant dense<0.000000e+00> : vector<8xf32>
    %85 = vector.multi_reduction <add>, %84, %cst_26 [1] : vector<8x8xf32> to vector<8xf32>
    %86 = vector.shape_cast %85 : vector<8xf32> to vector<8x1xf32>
    %87 = tpu.reciprocal %86 {approx = true} : vector<8x1xf32> -> vector<8x1xf32>
    %88 = vector.broadcast %87 : vector<8x1xf32> to vector<8x8xf32>
    %89 = arith.mulf %84, %88 : vector<8x8xf32>
    %90 = arith.truncf %89 : vector<8x8xf32> to vector<8x8xbf16>
    %cst_27 = arith.constant dense<0.000000e+00> : vector<8x8xf32>
    %91 = tpu.matmul %90, %78, %cst_27 {dimension_numbers = #tpu.dot_dimension_numbers<[1], [0], [0], [1], [0, 0, 1, 1], [], []>} : vector<8x8xbf16>, vector<8x8xbf16>, vector<8x8xf32> -> vector<8x8xf32>
    %92 = arith.truncf %91 : vector<8x8xf32> to vector<8x8xbf16>
    %93 = vector.extract_strided_slice %11 {offsets = [24, 0], sizes = [8, 32], strides = [1, 1]} : vector<32x32xbf16> to vector<8x32xbf16>
    %cst_28 = arith.constant dense<0.000000e+00> : vector<8x32xf32>
    %94 = tpu.matmul %92, %93, %cst_28 {dimension_numbers = #tpu.dot_dimension_numbers<[1], [0], [0], [1], [0, 0, 1, 1], [], []>} : vector<8x8xbf16>, vector<8x32xbf16>, vector<8x32xf32> -> vector<8x32xf32>
    %95 = arith.addf %75, %94 : vector<8x32xf32>
    %c0_29 = arith.constant 0 : index
    %c0_30 = arith.constant 0 : index
    %96 = vector.load %arg5[%c0_29, %c0_30] : memref<1x32xf32, #tpu.memory_space<vmem>>, vector<1x32xf32>
    %97 = vector.broadcast %96 : vector<1x32xf32> to vector<8x32xf32>
    %98 = arith.addf %95, %97 : vector<8x32xf32>
    %c0_31 = arith.constant 0 : index
    %c0_32 = arith.constant 0 : index
    %c0_33 = arith.constant 0 : index
    %99 = vector.load %arg6[%c0_31, %c0_32, %c0_33] : memref<1x8x32xf32, #tpu.memory_space<vmem>>, vector<1x8x32xf32>
    %100 = vector.shape_cast %99 : vector<1x8x32xf32> to vector<8x32xf32>
    %101 = vector.shape_cast %98 : vector<8x32xf32> to vector<1x8x32xf32>
    tpu.vector_store %arg6[%c0_31, %c0_32, %c0_33], %101 {strides = array<i32>} : memref<1x8x32xf32, #tpu.memory_space<vmem>>, vector<1x8x32xf32>,
    return
  }
  func.func @transform_0(%arg0: i32) -> (i32, i32, i32) {
    %c0_i32 = arith.constant 0 : i32
    %c0_i32_0 = arith.constant 0 : i32
    %c0_i32_1 = arith.constant 0 : i32
    return %arg0, %c0_i32, %c0_i32_0 : i32, i32, i32
  }
  func.func @transform_1(%arg0: i32) -> (i32, i32) {
    %c0_i32 = arith.constant 0 : i32
    %c0_i32_0 = arith.constant 0 : i32
    %c0_i32_1 = arith.constant 0 : i32
    return %c0_i32, %c0_i32_0 : i32, i32
  }
  func.func @transform_2(%arg0: i32) -> (i32, i32) {
    %c0_i32 = arith.constant 0 : i32
    %c0_i32_0 = arith.constant 0 : i32
    %c0_i32_1 = arith.constant 0 : i32
    return %c0_i32, %c0_i32_0 : i32, i32
  }
  func.func @transform_3(%arg0: i32) -> (i32, i32) {
    %c0_i32 = arith.constant 0 : i32
    %c0_i32_0 = arith.constant 0 : i32
    %c0_i32_1 = arith.constant 0 : i32
    return %c0_i32, %c0_i32_0 : i32, i32
  }
  func.func @transform_4(%arg0: i32) -> (i32, i32) {
    %c0_i32 = arith.constant 0 : i32
    %c0_i32_0 = arith.constant 0 : i32
    %c0_i32_1 = arith.constant 0 : i32
    return %c0_i32, %c0_i32_0 : i32, i32
  }
  func.func @transform_5(%arg0: i32) -> (i32, i32, i32) {
    %c0_i32 = arith.constant 0 : i32
    %c0_i32_0 = arith.constant 0 : i32
    %c0_i32_1 = arith.constant 0 : i32
    return %arg0, %c0_i32, %c0_i32_0 : i32, i32, i32
  }
}

</mosaic_0001>

<llo_original>
// kernel: tpu_custom_call.1
$region0: #{tpu_custom_call.1}
  #allocation0 [shape = 'u32[]', space=smem, size = 0x4, offset = 0x4, fixed_abs, tag = 'smem constant byte address 0x4 - core index']
  #allocation1 [shape = 'u32[144,128]{1,0:T(1,128)}', space=vmem, size = 0x12000, scoped, tag = 'internal scratch']
  %s0 = inlined_call_operand.hbm [shape: f32[2,8,32], index: 0, kind: input, shape index: {}]
  %s1 = inlined_call_operand.hbm [shape: bf16[32,96], index: 1, kind: input, shape index: {}]
  %s2 = inlined_call_operand.vmem [shape: f32[1,96], index: 2, kind: input, shape index: {}]
  %s3 = inlined_call_operand.hbm [shape: bf16[32,32], index: 3, kind: input, shape index: {}]
  %s4 = inlined_call_operand.vmem [shape: f32[1,32], index: 4, kind: input, shape index: {}]
  %s5 = inlined_call_operand.hbm [shape: f32[2,8,32], index: 5, kind: output, shape index: {}]
  %s6 = sld [smem:[#allocation0]]
  $region65: #{tpu_custom_call.1} parent=0
    _
  %s8 = ssub.s32 1, %s6
  %s9 = scalar_select 0, %s8, %s6
  $region1: #{tpu_custom_call.1} parent=0
    #allocation2 [shape = 'u8[8192]{0}', space=vmem, size = 0x2000, scoped, tag = 'input window, operand 0']
    #allocation3 [shape = 's32[2]{0}', space=sflag, size = 0x8, scoped, tag = 'scoped memory for tpu_custom_call.1']
    #allocation4 [shape = 's32[2]{0}', space=sflag, size = 0x8, scoped, tag = 'scoped memory for tpu_custom_call.1']
    #allocation5 [shape = 'u8[8192]{0}', space=vmem, size = 0x2000, scoped, tag = 'input window, operand 1, single buffered']
    #allocation6 [shape = 's32[1]{0}', space=sflag, size = 0x4, scoped, tag = 'scoped memory for tpu_custom_call.1']
    #allocation7 [shape = 'u8[8192]{0}', space=vmem, size = 0x2000, scoped, tag = 'input window, operand 3, single buffered']
    #allocation8 [shape = 'u8[8192]{0}', space=vmem, size = 0x2000, scoped, tag = 'output window, operand 0']
    %10 = vsyncpa [#allocation3], 0
    %s11 = scalar_lea.sflag [#allocation3], 1
    %12 = vsyncpa %s11, 0
    %13 = vsyncpa [#allocation6], 0
    %14 = vsyncpa [#allocation4], 0
    %s15 = scalar_lea.sflag [#allocation4], 1
    %16 = vsyncpa %s15, 0
    loop: start=0, step=1, limit=4
    $region2: #{tpu_custom_call.1} parent=1 // loop_pre_header
      _
    $region3: #{tpu_custom_call.1} parent=1 // loop_header
      %s18 = sphi 0, %s22
      %p19 = scmp.ge.s32.totalorder %s18, 4
      %s28 = sphi 0, %s30
      %s31 = sphi 0, %s28
      %s32 = sphi 0, %s31
      %s48 = sphi 0, %s32
      %s52 = sphi 0, %s52
      %s54 = sphi 0, %s52
      %s55 = sphi 0, %s54
      %s69 = sphi 0, %s55
      %s73 = sphi 0, %s73
      %s75 = sphi 0, %s73
      %s76 = sphi 0, %s75
      %s90 = sphi 0, %s76
      %s94 = sphi 0, %s94
      %s96 = sphi 0, %s94
      %s97 = sphi 0, %s96
      %s111 = sphi 0, %s97
      %s115 = sphi 0, %s115
      %s117 = sphi 0, %s115
      %s118 = sphi 0, %s117
      %s132 = sphi 0, %s118
      %s138 = sphi 0, %s140
      %s141 = sphi 0, %s138
      %s142 = sphi 0, %s141
      %s158 = sphi 0, %s142
    $region4: #{tpu_custom_call.1} parent=1 // loop_header_branch
      %21 = sbr.rel (%p19) target = $region8
    $region5: #{tpu_custom_call.1} parent=1 // loop_body
      %s23 = ssub.s32 %s18, 1
      %s24 = ssub.s32 %s18, 2
      %s25 = sadd.s32 %s18, 1
      %s26 = ssub.s32 %s18, %s25
      %p27 = scmp.eq.s32.totalorder %s26, 0
      %s29 = sadd.s32 %s28, 1
      %s30 = scalar_select %p27, %s28, %s29
      %p33 = pneg %p27
      %p34 = scmp.eq.s32.totalorder %s18, 1
      %p35 = por %p33, %p34
      %p36 = scmp.ne.s32.totalorder %s28, %s31
      %p37 = scmp.eq.s32.totalorder %s18, 0
      %p38 = por %p36, %p37
      %p39 = scmp.ne.s32.totalorder %s28, %s31
      %p40 = scmp.eq.s32.totalorder %s23, 1
      %p41 = por %p39, %p40
      %p42 = scmp.ne.s32.totalorder %s31, %s32
      %p43 = scmp.eq.s32.totalorder %s23, 0
      %p44 = por %p42, %p43
      %p45 = scmp.ne.s32.totalorder %s31, %s32
      %p46 = scmp.eq.s32.totalorder %s24, 1
      %p47 = por %p45, %p46
      %p49 = scmp.ne.s32.totalorder %s32, %s48
      %p50 = scmp.eq.s32.totalorder %s24, 0
      %p51 = por %p49, %p50
      %s53 = sadd.s32 %s52, 1
      %p56 = scmp.eq.s32.totalorder %s18, 1
      %p57 = scmp.ne.s32.totalorder %s52, %s54
      %p58 = scmp.eq.s32.totalorder %s18, 0
      %p59 = por %p57, %p58
      %p60 = scmp.ne.s32.totalorder %s52, %s54
      %p61 = scmp.eq.s32.totalorder %s23, 1
      %p62 = por %p60, %p61
      %p63 = scmp.ne.s32.totalorder %s54, %s55
      %p64 = scmp.eq.s32.totalorder %s23, 0
      %p65 = por %p63, %p64
      %p66 = scmp.ne.s32.totalorder %s54, %s55
      %p67 = scmp.eq.s32.totalorder %s24, 1
      %p68 = por %p66, %p67
      %p70 = scmp.ne.s32.totalorder %s55, %s69
      %p71 = scmp.eq.s32.totalorder %s24, 0
      %p72 = por %p70, %p71
      %s74 = sadd.s32 %s73, 1
      %p77 = scmp.eq.s32.totalorder %s18, 1
      %p78 = scmp.ne.s32.totalorder %s73, %s75
      %p79 = scmp.eq.s32.totalorder %s18, 0
      %p80 = por %p78, %p79
      %p81 = scmp.ne.s32.totalorder %s73, %s75
      %p82 = scmp.eq.s32.totalorder %s23, 1
      %p83 = por %p81, %p82
      %p84 = scmp.ne.s32.totalorder %s75, %s76
      %p85 = scmp.eq.s32.totalorder %s23, 0
      %p86 = por %p84, %p85
      %p87 = scmp.ne.s32.totalorder %s75, %s76
      %p88 = scmp.eq.s32.totalorder %s24, 1
      %p89 = por %p87, %p88
      %p91 = scmp.ne.s32.totalorder %s76, %s90
      %p92 = scmp.eq.s32.totalorder %s24, 0
      %p93 = por %p91, %p92
      %s95 = sadd.s32 %s94, 1
      %p98 = scmp.eq.s32.totalorder %s18, 1
      %p99 = scmp.ne.s32.totalorder %s94, %s96
      %p100 = scmp.eq.s32.totalorder %s18, 0
      %p101 = por %p99, %p100
      %p102 = scmp.ne.s32.totalorder %s94, %s96
      %p103 = scmp.eq.s32.totalorder %s23, 1
      %p104 = por %p102, %p103
      %p105 = scmp.ne.s32.totalorder %s96, %s97
      %p106 = scmp.eq.s32.totalorder %s23, 0
      %p107 = por %p105, %p106
      %p108 = scmp.ne.s32.totalorder %s96, %s97
      %p109 = scmp.eq.s32.totalorder %s24, 1
      %p110 = por %p108, %p109
      %p112 = scmp.ne.s32.totalorder %s97, %s111
      %p113 = scmp.eq.s32.totalorder %s24, 0
      %p114 = por %p112, %p113
      %s116 = sadd.s32 %s115, 1
      %p119 = scmp.eq.s32.totalorder %s18, 1
      %p120 = scmp.ne.s32.totalorder %s115, %s117
      %p121 = scmp.eq.s32.totalorder %s18, 0
      %p122 = por %p120, %p121
      %p123 = scmp.ne.s32.totalorder %s115, %s117
      %p124 = scmp.eq.s32.totalorder %s23, 1
      %p125 = por %p123, %p124
      %p126 = scmp.ne.s32.totalorder %s117, %s118
      %p127 = scmp.eq.s32.totalorder %s23, 0
      %p128 = por %p126, %p127
      %p129 = scmp.ne.s32.totalorder %s117, %s118
      %p130 = scmp.eq.s32.totalorder %s24, 1
      %p131 = por %p129, %p130
      %p133 = scmp.ne.s32.totalorder %s118, %s132
      %p134 = scmp.eq.s32.totalorder %s24, 0
      %p135 = por %p133, %p134
      %s136 = ssub.s32 %s18, %s25
      %p137 = scmp.eq.s32.totalorder %s136, 0
      %s139 = sadd.s32 %s138, 1
      %s140 = scalar_select %p137, %s138, %s139
      %p143 = pneg %p137
      %p144 = scmp.eq.s32.totalorder %s18, 1
      %p145 = por %p143, %p144
      %p146 = scmp.ne.s32.totalorder %s138, %s141
      %p147 = scmp.eq.s32.totalorder %s18, 0
      %p148 = por %p146, %p147
      %p149 = scmp.ne.s32.totalorder %s138, %s141
      %p150 = scmp.eq.s32.totalorder %s23, 1
      %p151 = por %p149, %p150
      %p152 = scmp.ne.s32.totalorder %s141, %s142
      %p153 = scmp.eq.s32.totalorder %s23, 0
      %p154 = por %p152, %p153
      %p155 = scmp.ne.s32.totalorder %s141, %s142
      %p156 = scmp.eq.s32.totalorder %s24, 1
      %p157 = por %p155, %p156
      %p159 = scmp.ne.s32.totalorder %s142, %s158
      %p160 = scmp.eq.s32.totalorder %s24, 0
      %p161 = por %p159, %p160
      %p162 = scmp.le.s32.totalorder 1, %s18
      %p163 = scmp.lt.s32.totalorder %s18, 3
      %p164 = pnand %p162, %p163
      %p165 = pneg %p164
      // Predicated region
      $region9: #{tpu_custom_call.1} parent=5 // pred_check
        _
      $region10: #{tpu_custom_call.1} parent=5 // pred_check_branch
        %167 = sbr.rel (%p164) target = $region12
      $region11: #{tpu_custom_call.1} parent=5 // pred_region
        %s168 = ssub.s32 %s18, 1
        // Predicated region
        $region13: #{tpu_custom_call.1} parent=11 // pred_check
          %p169 = pneg %p65
        $region14: #{tpu_custom_call.1} parent=11 // pred_check_branch
          %171 = sbr.rel (%p169) target = $region16
        $region15: #{tpu_custom_call.1} parent=11 // pred_region
          %s173 = ssub.s32 256, 256
          %174 = vsyncadd [#allocation6], %s173
          %s175 = sshll.u32 [#allocation5], 4
          %s176 = int_to_ptr.vmem [resolvable:$true] %s175
          %181 = dma.hbm_to_vmem [thread:$0]  %s1, 256, %s176, [#allocation6], 64, 64, 4
        $region16: #{tpu_custom_call.1} parent=11 // pred_fallthru
          _
        // Predicated region
        $region17: #{tpu_custom_call.1} parent=11 // pred_check
          %p182 = pneg %p86
        $region18: #{tpu_custom_call.1} parent=11 // pred_check_branch
          %184 = sbr.rel (%p182) target = $region20
        $region19: #{tpu_custom_call.1} parent=11 // pred_region
          _
        $region20: #{tpu_custom_call.1} parent=11 // pred_fallthru
          _
        // Predicated region
        $region21: #{tpu_custom_call.1} parent=11 // pred_check
          %p185 = pneg %p107
        $region22: #{tpu_custom_call.1} parent=11 // pred_check_branch
          %187 = sbr.rel (%p185) target = $region24
        $region23: #{tpu_custom_call.1} parent=11 // pred_region
          %s189 = ssub.s32 256, 256
          %190 = vsyncadd [#allocation6], %s189
          %s191 = sshll.u32 [#allocation7], 4
          %s192 = int_to_ptr.vmem [resolvable:$true] %s191
          %197 = dma.hbm_to_vmem [thread:$0]  %s3, 256, %s192, [#allocation6], 64, 64, 4
        $region24: #{tpu_custom_call.1} parent=11 // pred_fallthru
          _
        // Predicated region
        $region25: #{tpu_custom_call.1} parent=11 // pred_check
          %p198 = pneg %p128
        $region26: #{tpu_custom_call.1} parent=11 // pred_check_branch
          %200 = sbr.rel (%p198) target = $region28
        $region27: #{tpu_custom_call.1} parent=11 // pred_region
          _
        $region28: #{tpu_custom_call.1} parent=11 // pred_fallthru
          _
      $region12: #{tpu_custom_call.1} parent=5 // pred_fallthru
        _
      %p201 = scmp.lt.s32.totalorder %s18, 2
      // Predicated region
      $region29: #{tpu_custom_call.1} parent=5 // pred_check
        %p202 = pneg %p201
      $region30: #{tpu_custom_call.1} parent=5 // pred_check_branch
        %204 = sbr.rel (%p202) target = $region32
      $region31: #{tpu_custom_call.1} parent=5 // pred_region
        // Predicated region
        $region33: #{tpu_custom_call.1} parent=31 // pred_check
          %p205 = pneg %p38
        $region34: #{tpu_custom_call.1} parent=31 // pred_check_branch
          %207 = sbr.rel (%p205) target = $region36
        $region35: #{tpu_custom_call.1} parent=31 // pred_region
          %s208 = sand.u32 %s28, 1
          %s209 = scalar_lea.sflag [#allocation3], %s208
          %s210 = sand.u32 %s28, 1
          %s211 = smul.addr %s210, 8
          %s212 = scalar_lea.vmem [#allocation2], %s211
          %s214 = ssub.s32 128, 128
          %215 = vsyncadd %s209, %s214
          %s216 = smul.addr %s18, 128
          %s217 = scalar_lea.hbm %s0, %s216
          %s219 = sshll.u32 %s212, 4
          %s220 = int_to_ptr.vmem [resolvable:$true] %s219
          %222 = dma.hbm_to_vmem [thread:$0]  %s217, 128, %s220, %s209
        $region36: #{tpu_custom_call.1} parent=31 // pred_fallthru
          _
      $region32: #{tpu_custom_call.1} parent=5 // pred_fallthru
        _
      %p223 = scmp.le.s32.totalorder 1, %s18
      %p224 = scmp.lt.s32.totalorder %s18, 3
      %p225 = pnand %p223, %p224
      %p226 = pneg %p225
      // Predicated region
      $region37: #{tpu_custom_call.1} parent=5 // pred_check
        _
      $region38: #{tpu_custom_call.1} parent=5 // pred_check_branch
        %228 = sbr.rel (%p225) target = $region40
      $region39: #{tpu_custom_call.1} parent=5 // pred_region
        %s229 = ssub.s32 %s18, 1
        %s230 = sand.u32 %s31, 1
        %s231 = scalar_lea.sflag [#allocation3], %s230
        %s232 = sand.u32 %s31, 1
        %s233 = smul.addr %s232, 8
        %s234 = scalar_lea.vmem [#allocation2], %s233
        // Predicated region
        $region41: #{tpu_custom_call.1} parent=39 // pred_check
          %p235 = pneg %p44
        $region42: #{tpu_custom_call.1} parent=39 // pred_check_branch
          %237 = sbr.rel (%p235) target = $region44
        $region43: #{tpu_custom_call.1} parent=39 // pred_region
          %238 = dma.done %s231, 128
        $region44: #{tpu_custom_call.1} parent=39 // pred_fallthru
          _
        // Predicated region
        $region45: #{tpu_custom_call.1} parent=39 // pred_check
          %p239 = pneg %p65
        $region46: #{tpu_custom_call.1} parent=39 // pred_check_branch
          %241 = sbr.rel (%p239) target = $region48
        $region47: #{tpu_custom_call.1} parent=39 // pred_region
          %242 = dma.done [#allocation6], 256
        $region48: #{tpu_custom_call.1} parent=39 // pred_fallthru
          _
        // Predicated region
        $region49: #{tpu_custom_call.1} parent=39 // pred_check
          %p243 = pneg %p107
        $region50: #{tpu_custom_call.1} parent=39 // pred_check_branch
          %245 = sbr.rel (%p243) target = $region52
        $region51: #{tpu_custom_call.1} parent=39 // pred_region
          %246 = dma.done [#allocation6], 256
        $region52: #{tpu_custom_call.1} parent=39 // pred_fallthru
          _
        %s247 = sand.u32 %s31, 1
        %s248 = scalar_lea.sflag [#allocation3], %s247
        %s249 = sand.u32 %s31, 1
        %s250 = smul.addr %s249, 8
        %s251 = scalar_lea.vmem [#allocation2], %s250
        %p252 = pneg %p44
        %p253 = pneg %p41
        %p254 = pneg %p65
        %p255 = pneg %p62
        %p256 = pneg %p86
        %p257 = pneg %p83
        %p258 = pneg %p107
        %p259 = pneg %p104
        %p260 = pneg %p128
        %p261 = pneg %p125
        %p262 = pneg %p154
        %p263 = pneg %p151
        %s264 = sand.u32 %s141, 1
        %s265 = scalar_lea.sflag [#allocation4], %s264
        %s266 = sand.u32 %s141, 1
        %s267 = smul.addr %s266, 8
        %s268 = scalar_lea.vmem [#allocation8], %s267
        %v270 = vld [vmem:[%s234] sm:$0xff]
        %v271 = vpack.c.bf16 %v270, %v270
        %v272 = vld [vmem:[#allocation5] sm:$0xf]
        %v273 = vld [vmem:[#allocation5 + $0x4] sm:$0xf]
        %v274 = vld [vmem:[#allocation5 + $0x8] sm:$0xf]
        %v275 = vld [vmem:[#allocation5 + $0xc] sm:$0xf]
        %v276 = vld [vmem:[%s2] sm:$0x1]
        %v278 = vlaneseq
        %v279 = vshrl.u32 %v278, 7
        %v280 = vsub.s32 0, %v279
        %v281 = vrot.slane %v276, %v280
        %v287 = vunpack.c.l.b16 %v272
        %v288 = vunpack.c.l.b16 %v273
        %v289 = vunpack.c.l.b16 %v274
        %v290 = vunpack.c.l.b16 %v275
        %v291 = vpack.c.b16 %v288, %v287
        %v292 = vpack.c.b16 %v290, %v289
        %vm295 = vcmask 261120
        %v297 = vsel %vm295, %v271, 0
        %299 = vmatprep.subr.bf16.mxu0 0
        %300 = vmatpush1.bf16.msra.mxu0 %v291
        %301 = vmatprep.subr.bf16.mxu0 0
        %302 = vmatpush1.bf16.msra.mxu0 %v292
        %303 = vmatprep.subr.bf16.mxu0 0
        %304 = vmatpush1.bf16.msra.mxu0 0
        %305 = vmatprep.subr.bf16.mxu0 0
        %306 = vmatpush1.bf16.msra.mxu0 0
        %307 = vmatprep.subr.bf16.mxu0 0
        %308 = vmatpush1.bf16.msra.mxu0 0
        %309 = vmatprep.subr.bf16.mxu0 0
        %310 = vmatpush1.bf16.msra.mxu0 0
        %311 = vmatprep.subr.bf16.mxu0 0
        %312 = vmatpush1.bf16.msra.mxu0 0
        %313 = vmatprep.subr.bf16.mxu0 0
        %314 = vmatpush1.bf16.msra.mxu0 0
        %315 = vmatprep.subr.bf16.mxu0 0
        %316 = vmatpush1.bf16.msra.mxu0 0
        %317 = vmatprep.subr.bf16.mxu0 0
        %318 = vmatpush1.bf16.msra.mxu0 0
        %319 = vmatprep.subr.bf16.mxu0 0
        %320 = vmatpush1.bf16.msra.mxu0 0
        %321 = vmatprep.subr.bf16.mxu0 0
        %322 = vmatpush1.bf16.msra.mxu0 0
        %323 = vmatprep.subr.bf16.mxu0 0
        %324 = vmatpush1.bf16.msra.mxu0 0
        %325 = vmatprep.subr.bf16.mxu0 0
        %326 = vmatpush1.bf16.msra.mxu0 0
        %327 = vmatprep.subr.bf16.mxu0 0
        %328 = vmatpush1.bf16.msra.mxu0 0
        %329 = vmatprep.subr.bf16.mxu0 0
        %330 = vmatpush1.bf16.msra.mxu0 0
        %331 = vmatprep.mubr.bf16.mxu0 0
        %332 = vmatmul.mubr.bf16.gmra.mrb[0].mxu0 %v297
        %v333 = vpop.f32.mrb[0].mxu0
        %v334 = vadd.f32 %v281, %v333
        %v335 = vpop.f32.mrb[0].mxu0
        %v336 = vpop.f32.mrb[0].mxu0
        %v337 = vpop.f32.mrb[0].mxu0
        %338 = vdwg.mxu0
        %v339 = vld [vmem:[#allocation7] sm:$0xf]
        %v340 = vld [vmem:[#allocation7 + $0x4] sm:$0xf]
        %v341 = vld [vmem:[#allocation7 + $0x8] sm:$0xf]
        %v342 = vld [vmem:[#allocation7 + $0xc] sm:$0xf]
        %v343 = vpack.c.bf16 %v334, %v334
        %345 = vrot.lane.b32.xlu0 %v343, 96
        %v346 = vpop.permute.xlu0 %345
        %vm347 = vcmask 64512
        %v349 = vsel %vm347, %v343, 0
        %v352 = vsel %vm347, %v346, 0
        %354 = vmatprep.subr.bf16.mxu0 0
        %355 = vmatpush1.bf16.xpose.msra.mxu0 %v352
        %356 = vmatprep.subr.bf16.mxu0 0
        %357 = vmatpush1.bf16.xpose.msra.mxu0 0
        %358 = vmatprep.subr.bf16.mxu0 0
        %359 = vmatpush1.bf16.xpose.msra.mxu0 0
        %360 = vmatprep.subr.bf16.mxu0 0
        %361 = vmatpush1.bf16.xpose.msra.mxu0 0
        %362 = vmatprep.subr.bf16.mxu0 0
        %363 = vmatpush1.bf16.xpose.msra.mxu0 0
        %364 = vmatprep.subr.bf16.mxu0 0
        %365 = vmatpush1.bf16.xpose.msra.mxu0 0
        %366 = vmatprep.subr.bf16.mxu0 0
        %367 = vmatpush1.bf16.xpose.msra.mxu0 0
        %368 = vmatprep.subr.bf16.mxu0 0
        %369 = vmatpush1.bf16.xpose.msra.mxu0 0
        %370 = vmatprep.subr.bf16.mxu0 0
        %371 = vmatpush1.bf16.xpose.msra.mxu0 0
        %372 = vmatprep.subr.bf16.mxu0 0
        %373 = vmatpush1.bf16.xpose.msra.mxu0 0
        %374 = vmatprep.subr.bf16.mxu0 0
        %375 = vmatpush1.bf16.xpose.msra.mxu0 0
        %376 = vmatprep.subr.bf16.mxu0 0
        %377 = vmatpush1.bf16.xpose.msra.mxu0 0
        %378 = vmatprep.subr.bf16.mxu0 0
        %379 = vmatpush1.bf16.xpose.msra.mxu0 0
        %380 = vmatprep.subr.bf16.mxu0 0
        %381 = vmatpush1.bf16.xpose.msra.mxu0 0
        %382 = vmatprep.subr.bf16.mxu0 0
        %383 = vmatpush1.bf16.xpose.msra.mxu0 0
        %384 = vmatprep.subr.bf16.mxu0 0
        %385 = vmatpush1.bf16.xpose.msra.mxu0 0
        %386 = vmatprep.mubr.bf16.mxu0 0
        %387 = vmatmul.mubr.bf16.gmra.mrb[0].mxu0 %v349
        %v388 = vpop.f32.mrb[0].mxu0
        %v389 = vadd.f32 0.0, %v388
        %v390 = vpop.f32.mrb[0].mxu0
        %v391 = vpop.f32.mrb[0].mxu0
        %v392 = vpop.f32.mrb[0].mxu0
        %393 = vdwg.mxu0
        %v394 = vsel %vm347, %v389, -inf
        %395 = vmax.xlane.f32.xlu0 %v394
        %v396 = vpop.xlane.xlu0 %395
        %v397 = vsub.f32 %v389, %v396
        %v398 = vmul.f32 %v397, 1.442695
        %v399 = vpow.pop %v398
        %v400 = vsel %vm347, %v399, 0.0
        %401 = vadd.xlane.f32.xlu0 %v400
        %v402 = vpop.xlane.xlu0 %401
        %v403 = vrcp.pop %v402
        %v404 = vmul.f32 %v399, %v403
        %v405 = vpack.c.bf16 %v404, %v404
        %406 = vrot.lane.b32.xlu0 %v343, 64
        %v407 = vpop.permute.xlu0 %406
        %v409 = vsel %vm347, %v405, 0
        %vm411 = vcmask 1043456
        %v413 = vsel %vm411, %v407, 0
        %415 = vmatprep.subr.bf16.mxu0 0
        %416 = vmatpush1.bf16.msra.mxu0 %v413
        %417 = vmatprep.subr.bf16.mxu0 0
        %418 = vmatpush1.bf16.msra.mxu0 0
        %419 = vmatprep.subr.bf16.mxu0 0
        %420 = vmatpush1.bf16.msra.mxu0 0
        %421 = vmatprep.subr.bf16.mxu0 0
        %422 = vmatpush1.bf16.msra.mxu0 0
        %423 = vmatprep.subr.bf16.mxu0 0
        %424 = vmatpush1.bf16.msra.mxu0 0
        %425 = vmatprep.subr.bf16.mxu0 0
        %426 = vmatpush1.bf16.msra.mxu0 0
        %427 = vmatprep.subr.bf16.mxu0 0
        %428 = vmatpush1.bf16.msra.mxu0 0
        %429 = vmatprep.subr.bf16.mxu0 0
        %430 = vmatpush1.bf16.msra.mxu0 0
        %431 = vmatprep.subr.bf16.mxu0 0
        %432 = vmatpush1.bf16.msra.mxu0 0
        %433 = vmatprep.subr.bf16.mxu0 0
        %434 = vmatpush1.bf16.msra.mxu0 0
        %435 = vmatprep.subr.bf16.mxu0 0
        %436 = vmatpush1.bf16.msra.mxu0 0
        %437 = vmatprep.subr.bf16.mxu0 0
        %438 = vmatpush1.bf16.msra.mxu0 0
        %439 = vmatprep.subr.bf16.mxu0 0
        %440 = vmatpush1.bf16.msra.mxu0 0
        %441 = vmatprep.subr.bf16.mxu0 0
        %442 = vmatpush1.bf16.msra.mxu0 0
        %443 = vmatprep.subr.bf16.mxu0 0
        %444 = vmatpush1.bf16.msra.mxu0 0
        %445 = vmatprep.subr.bf16.mxu0 0
        %446 = vmatpush1.bf16.msra.mxu0 0
        %447 = vmatprep.mubr.bf16.mxu0 0
        %448 = vmatmul.mubr.bf16.gmra.mrb[0].mxu0 %v409
        %v449 = vpop.f32.mrb[0].mxu0
        %v450 = vadd.f32 0.0, %v449
        %v451 = vpop.f32.mrb[0].mxu0
        %v452 = vpop.f32.mrb[0].mxu0
        %v453 = vpop.f32.mrb[0].mxu0
        %454 = vdwg.mxu0
        %v455 = vpack.c.bf16 %v450, %v450
        %456 = vrot.lane.b32.xlu0 %v343, 120
        %v457 = vpop.permute.xlu0 %456
        %458 = vrot.lane.b32.xlu0 %v343, 88
        %v459 = vpop.permute.xlu0 %458
        %v461 = vsel %vm347, %v457, 0
        %v464 = vsel %vm347, %v459, 0
        %466 = vmatprep.subr.bf16.mxu0 0
        %467 = vmatpush1.bf16.xpose.msra.mxu0 %v464
        %468 = vmatprep.subr.bf16.mxu0 0
        %469 = vmatpush1.bf16.xpose.msra.mxu0 0
        %470 = vmatprep.subr.bf16.mxu0 0
        %471 = vmatpush1.bf16.xpose.msra.mxu0 0
        %472 = vmatprep.subr.bf16.mxu0 0
        %473 = vmatpush1.bf16.xpose.msra.mxu0 0
        %474 = vmatprep.subr.bf16.mxu0 0
        %475 = vmatpush1.bf16.xpose.msra.mxu0 0
        %476 = vmatprep.subr.bf16.mxu0 0
        %477 = vmatpush1.bf16.xpose.msra.mxu0 0
        %478 = vmatprep.subr.bf16.mxu0 0
        %479 = vmatpush1.bf16.xpose.msra.mxu0 0
        %480 = vmatprep.subr.bf16.mxu0 0
        %481 = vmatpush1.bf16.xpose.msra.mxu0 0
        %482 = vmatprep.subr.bf16.mxu0 0
        %483 = vmatpush1.bf16.xpose.msra.mxu0 0
        %484 = vmatprep.subr.bf16.mxu0 0
        %485 = vmatpush1.bf16.xpose.msra.mxu0 0
        %486 = vmatprep.subr.bf16.mxu0 0
        %487 = vmatpush1.bf16.xpose.msra.mxu0 0
        %488 = vmatprep.subr.bf16.mxu0 0
        %489 = vmatpush1.bf16.xpose.msra.mxu0 0
        %490 = vmatprep.subr.bf16.mxu0 0
        %491 = vmatpush1.bf16.xpose.msra.mxu0 0
        %492 = vmatprep.subr.bf16.mxu0 0
        %493 = vmatpush1.bf16.xpose.msra.mxu0 0
        %494 = vmatprep.subr.bf16.mxu0 0
        %495 = vmatpush1.bf16.xpose.msra.mxu0 0
        %496 = vmatprep.subr.bf16.mxu0 0
        %497 = vmatpush1.bf16.xpose.msra.mxu0 0
        %498 = vmatprep.mubr.bf16.mxu0 0
        %499 = vmatmul.mubr.bf16.gmra.mrb[0].mxu0 %v461
        %v500 = vpop.f32.mrb[0].mxu0
        %v501 = vadd.f32 0.0, %v500
        %v502 = vpop.f32.mrb[0].mxu0
        %v503 = vpop.f32.mrb[0].mxu0
        %v504 = vpop.f32.mrb[0].mxu0
        %505 = vdwg.mxu0
        %v506 = vsel %vm347, %v501, -inf
        %507 = vmax.xlane.f32.xlu0 %v506
        %v508 = vpop.xlane.xlu0 %507
        %v509 = vsub.f32 %v501, %v508
        %v510 = vmul.f32 %v509, 1.442695
        %v511 = vpow.pop %v510
        %v512 = vsel %vm347, %v511, 0.0
        %513 = vadd.xlane.f32.xlu0 %v512
        %v514 = vpop.xlane.xlu0 %513
        %v515 = vrcp.pop %v514
        %v516 = vmul.f32 %v511, %v515
        %v517 = vpack.c.bf16 %v516, %v516
        %518 = vrot.lane.b32.xlu0 %v343, 56
        %v519 = vpop.permute.xlu0 %518
        %v521 = vsel %vm347, %v517, 0
        %v524 = vsel %vm411, %v519, 0
        %526 = vmatprep.subr.bf16.mxu0 0
        %527 = vmatpush1.bf16.msra.mxu0 %v524
        %528 = vmatprep.subr.bf16.mxu0 0
        %529 = vmatpush1.bf16.msra.mxu0 0
        %530 = vmatprep.subr.bf16.mxu0 0
        %531 = vmatpush1.bf16.msra.mxu0 0
        %532 = vmatprep.subr.bf16.mxu0 0
        %533 = vmatpush1.bf16.msra.mxu0 0
        %534 = vmatprep.subr.bf16.mxu0 0
        %535 = vmatpush1.bf16.msra.mxu0 0
        %536 = vmatprep.subr.bf16.mxu0 0
        %537 = vmatpush1.bf16.msra.mxu0 0
        %538 = vmatprep.subr.bf16.mxu0 0
        %539 = vmatpush1.bf16.msra.mxu0 0
        %540 = vmatprep.subr.bf16.mxu0 0
        %541 = vmatpush1.bf16.msra.mxu0 0
        %542 = vmatprep.subr.bf16.mxu0 0
        %543 = vmatpush1.bf16.msra.mxu0 0
        %544 = vmatprep.subr.bf16.mxu0 0
        %545 = vmatpush1.bf16.msra.mxu0 0
        %546 = vmatprep.subr.bf16.mxu0 0
        %547 = vmatpush1.bf16.msra.mxu0 0
        %548 = vmatprep.subr.bf16.mxu0 0
        %549 = vmatpush1.bf16.msra.mxu0 0
        %550 = vmatprep.subr.bf16.mxu0 0
        %551 = vmatpush1.bf16.msra.mxu0 0
        %552 = vmatprep.subr.bf16.mxu0 0
        %553 = vmatpush1.bf16.msra.mxu0 0
        %554 = vmatprep.subr.bf16.mxu0 0
        %555 = vmatpush1.bf16.msra.mxu0 0
        %556 = vmatprep.subr.bf16.mxu0 0
        %557 = vmatpush1.bf16.msra.mxu0 0
        %558 = vmatprep.mubr.bf16.mxu0 0
        %559 = vmatmul.mubr.bf16.gmra.mrb[0].mxu0 %v521
        %v560 = vpop.f32.mrb[0].mxu0
        %v561 = vadd.f32 0.0, %v560
        %v562 = vpop.f32.mrb[0].mxu0
        %v563 = vpop.f32.mrb[0].mxu0
        %v564 = vpop.f32.mrb[0].mxu0
        %565 = vdwg.mxu0
        %v566 = vpack.c.bf16 %v561, %v561
        %v568 = vsel %vm347, %v566, 0
        %v571 = vsel %vm411, %v340, 0
        %573 = vmatprep.subr.bf16.mxu0 0
        %574 = vmatpush1.bf16.msra.mxu0 %v571
        %575 = vmatprep.subr.bf16.mxu0 0
        %576 = vmatpush1.bf16.msra.mxu0 0
        %577 = vmatprep.subr.bf16.mxu0 0
        %578 = vmatpush1.bf16.msra.mxu0 0
        %579 = vmatprep.subr.bf16.mxu0 0
        %580 = vmatpush1.bf16.msra.mxu0 0
        %581 = vmatprep.subr.bf16.mxu0 0
        %582 = vmatpush1.bf16.msra.mxu0 0
        %583 = vmatprep.subr.bf16.mxu0 0
        %584 = vmatpush1.bf16.msra.mxu0 0
        %585 = vmatprep.subr.bf16.mxu0 0
        %586 = vmatpush1.bf16.msra.mxu0 0
        %587 = vmatprep.subr.bf16.mxu0 0
        %588 = vmatpush1.bf16.msra.mxu0 0
        %589 = vmatprep.subr.bf16.mxu0 0
        %590 = vmatpush1.bf16.msra.mxu0 0
        %591 = vmatprep.subr.bf16.mxu0 0
        %592 = vmatpush1.bf16.msra.mxu0 0
        %593 = vmatprep.subr.bf16.mxu0 0
        %594 = vmatpush1.bf16.msra.mxu0 0
        %595 = vmatprep.subr.bf16.mxu0 0
        %596 = vmatpush1.bf16.msra.mxu0 0
        %597 = vmatprep.subr.bf16.mxu0 0
        %598 = vmatpush1.bf16.msra.mxu0 0
        %599 = vmatprep.subr.bf16.mxu0 0
        %600 = vmatpush1.bf16.msra.mxu0 0
        %601 = vmatprep.subr.bf16.mxu0 0
        %602 = vmatpush1.bf16.msra.mxu0 0
        %603 = vmatprep.subr.bf16.mxu0 0
        %604 = vmatpush1.bf16.msra.mxu0 0
        %605 = vmatprep.mubr.bf16.mxu0 0
        %606 = vmatmul.mubr.bf16.gmra.mrb[0].mxu0 %v568
        %v607 = vpop.f32.mrb[0].mxu0
        %v608 = vadd.f32 0.0, %v607
        %v609 = vpop.f32.mrb[0].mxu0
        %v610 = vpop.f32.mrb[0].mxu0
        %v611 = vpop.f32.mrb[0].mxu0
        %612 = vdwg.mxu0
        %v614 = vsel %vm347, %v455, 0
        %v617 = vsel %vm411, %v339, 0
        %619 = vmatprep.subr.bf16.mxu0 0
        %620 = vmatpush1.bf16.msra.mxu0 %v617
        %621 = vmatprep.subr.bf16.mxu0 0
        %622 = vmatpush1.bf16.msra.mxu0 0
        %623 = vmatprep.subr.bf16.mxu0 0
        %624 = vmatpush1.bf16.msra.mxu0 0
        %625 = vmatprep.subr.bf16.mxu0 0
        %626 = vmatpush1.bf16.msra.mxu0 0
        %627 = vmatprep.subr.bf16.mxu0 0
        %628 = vmatpush1.bf16.msra.mxu0 0
        %629 = vmatprep.subr.bf16.mxu0 0
        %630 = vmatpush1.bf16.msra.mxu0 0
        %631 = vmatprep.subr.bf16.mxu0 0
        %632 = vmatpush1.bf16.msra.mxu0 0
        %633 = vmatprep.subr.bf16.mxu0 0
        %634 = vmatpush1.bf16.msra.mxu0 0
        %635 = vmatprep.subr.bf16.mxu0 0
        %636 = vmatpush1.bf16.msra.mxu0 0
        %637 = vmatprep.subr.bf16.mxu0 0
        %638 = vmatpush1.bf16.msra.mxu0 0
        %639 = vmatprep.subr.bf16.mxu0 0
        %640 = vmatpush1.bf16.msra.mxu0 0
        %641 = vmatprep.subr.bf16.mxu0 0
        %642 = vmatpush1.bf16.msra.mxu0 0
        %643 = vmatprep.subr.bf16.mxu0 0
        %644 = vmatpush1.bf16.msra.mxu0 0
        %645 = vmatprep.subr.bf16.mxu0 0
        %646 = vmatpush1.bf16.msra.mxu0 0
        %647 = vmatprep.subr.bf16.mxu0 0
        %648 = vmatpush1.bf16.msra.mxu0 0
        %649 = vmatprep.subr.bf16.mxu0 0
        %650 = vmatpush1.bf16.msra.mxu0 0
        %651 = vmatprep.mubr.bf16.mxu0 0
        %652 = vmatmul.mubr.bf16.gmra.mrb[0].mxu0 %v614
        %v653 = vpop.f32.mrb[0].mxu0
        %v654 = vadd.f32 %v608, %v653
        %v655 = vpop.f32.mrb[0].mxu0
        %v656 = vpop.f32.mrb[0].mxu0
        %v657 = vpop.f32.mrb[0].mxu0
        %658 = vdwg.mxu0
        %659 = vrot.lane.b32.xlu0 %v343, 112
        %v660 = vpop.permute.xlu0 %659
        %661 = vrot.lane.b32.xlu0 %v343, 80
        %v662 = vpop.permute.xlu0 %661
        %v664 = vsel %vm347, %v660, 0
        %v667 = vsel %vm347, %v662, 0
        %669 = vmatprep.subr.bf16.mxu0 0
        %670 = vmatpush1.bf16.xpose.msra.mxu0 %v667
        %671 = vmatprep.subr.bf16.mxu0 0
        %672 = vmatpush1.bf16.xpose.msra.mxu0 0
        %673 = vmatprep.subr.bf16.mxu0 0
        %674 = vmatpush1.bf16.xpose.msra.mxu0 0
        %675 = vmatprep.subr.bf16.mxu0 0
        %676 = vmatpush1.bf16.xpose.msra.mxu0 0
        %677 = vmatprep.subr.bf16.mxu0 0
        %678 = vmatpush1.bf16.xpose.msra.mxu0 0
        %679 = vmatprep.subr.bf16.mxu0 0
        %680 = vmatpush1.bf16.xpose.msra.mxu0 0
        %681 = vmatprep.subr.bf16.mxu0 0
        %682 = vmatpush1.bf16.xpose.msra.mxu0 0
        %683 = vmatprep.subr.bf16.mxu0 0
        %684 = vmatpush1.bf16.xpose.msra.mxu0 0
        %685 = vmatprep.subr.bf16.mxu0 0
        %686 = vmatpush1.bf16.xpose.msra.mxu0 0
        %687 = vmatprep.subr.bf16.mxu0 0
        %688 = vmatpush1.bf16.xpose.msra.mxu0 0
        %689 = vmatprep.subr.bf16.mxu0 0
        %690 = vmatpush1.bf16.xpose.msra.mxu0 0
        %691 = vmatprep.subr.bf16.mxu0 0
        %692 = vmatpush1.bf16.xpose.msra.mxu0 0
        %693 = vmatprep.subr.bf16.mxu0 0
        %694 = vmatpush1.bf16.xpose.msra.mxu0 0
        %695 = vmatprep.subr.bf16.mxu0 0
        %696 = vmatpush1.bf16.xpose.msra.mxu0 0
        %697 = vmatprep.subr.bf16.mxu0 0
        %698 = vmatpush1.bf16.xpose.msra.mxu0 0
        %699 = vmatprep.subr.bf16.mxu0 0
        %700 = vmatpush1.bf16.xpose.msra.mxu0 0
        %701 = vmatprep.mubr.bf16.mxu0 0
        %702 = vmatmul.mubr.bf16.gmra.mrb[0].mxu0 %v664
        %v703 = vpop.f32.mrb[0].mxu0
        %v704 = vadd.f32 0.0, %v703
        %v705 = vpop.f32.mrb[0].mxu0
        %v706 = vpop.f32.mrb[0].mxu0
        %v707 = vpop.f32.mrb[0].mxu0
        %708 = vdwg.mxu0
        %v709 = vsel %vm347, %v704, -inf
        %710 = vmax.xlane.f32.xlu0 %v709
        %v711 = vpop.xlane.xlu0 %710
        %v712 = vsub.f32 %v704, %v711
        %v713 = vmul.f32 %v712, 1.442695
        %v714 = vpow.pop %v713
        %v715 = vsel %vm347, %v714, 0.0
        %716 = vadd.xlane.f32.xlu0 %v715
        %v717 = vpop.xlane.xlu0 %716
        %v718 = vrcp.pop %v717
        %v719 = vmul.f32 %v714, %v718
        %v720 = vpack.c.bf16 %v719, %v719
        %721 = vrot.lane.b32.xlu0 %v343, 48
        %v722 = vpop.permute.xlu0 %721
        %v724 = vsel %vm347, %v720, 0
        %v727 = vsel %vm411, %v722, 0
        %729 = vmatprep.subr.bf16.mxu0 0
        %730 = vmatpush1.bf16.msra.mxu0 %v727
        %731 = vmatprep.subr.bf16.mxu0 0
        %732 = vmatpush1.bf16.msra.mxu0 0
        %733 = vmatprep.subr.bf16.mxu0 0
        %734 = vmatpush1.bf16.msra.mxu0 0
        %735 = vmatprep.subr.bf16.mxu0 0
        %736 = vmatpush1.bf16.msra.mxu0 0
        %737 = vmatprep.subr.bf16.mxu0 0
        %738 = vmatpush1.bf16.msra.mxu0 0
        %739 = vmatprep.subr.bf16.mxu0 0
        %740 = vmatpush1.bf16.msra.mxu0 0
        %741 = vmatprep.subr.bf16.mxu0 0
        %742 = vmatpush1.bf16.msra.mxu0 0
        %743 = vmatprep.subr.bf16.mxu0 0
        %744 = vmatpush1.bf16.msra.mxu0 0
        %745 = vmatprep.subr.bf16.mxu0 0
        %746 = vmatpush1.bf16.msra.mxu0 0
        %747 = vmatprep.subr.bf16.mxu0 0
        %748 = vmatpush1.bf16.msra.mxu0 0
        %749 = vmatprep.subr.bf16.mxu0 0
        %750 = vmatpush1.bf16.msra.mxu0 0
        %751 = vmatprep.subr.bf16.mxu0 0
        %752 = vmatpush1.bf16.msra.mxu0 0
        %753 = vmatprep.subr.bf16.mxu0 0
        %754 = vmatpush1.bf16.msra.mxu0 0
        %755 = vmatprep.subr.bf16.mxu0 0
        %756 = vmatpush1.bf16.msra.mxu0 0
        %757 = vmatprep.subr.bf16.mxu0 0
        %758 = vmatpush1.bf16.msra.mxu0 0
        %759 = vmatprep.subr.bf16.mxu0 0
        %760 = vmatpush1.bf16.msra.mxu0 0
        %761 = vmatprep.mubr.bf16.mxu0 0
        %762 = vmatmul.mubr.bf16.gmra.mrb[0].mxu0 %v724
        %v763 = vpop.f32.mrb[0].mxu0
        %v764 = vadd.f32 0.0, %v763
        %v765 = vpop.f32.mrb[0].mxu0
        %v766 = vpop.f32.mrb[0].mxu0
        %v767 = vpop.f32.mrb[0].mxu0
        %768 = vdwg.mxu0
        %v769 = vpack.c.bf16 %v764, %v764
        %v771 = vsel %vm347, %v769, 0
        %v774 = vsel %vm411, %v341, 0
        %776 = vmatprep.subr.bf16.mxu0 0
        %777 = vmatpush1.bf16.msra.mxu0 %v774
        %778 = vmatprep.subr.bf16.mxu0 0
        %779 = vmatpush1.bf16.msra.mxu0 0
        %780 = vmatprep.subr.bf16.mxu0 0
        %781 = vmatpush1.bf16.msra.mxu0 0
        %782 = vmatprep.subr.bf16.mxu0 0
        %783 = vmatpush1.bf16.msra.mxu0 0
        %784 = vmatprep.subr.bf16.mxu0 0
        %785 = vmatpush1.bf16.msra.mxu0 0
        %786 = vmatprep.subr.bf16.mxu0 0
        %787 = vmatpush1.bf16.msra.mxu0 0
        %788 = vmatprep.subr.bf16.mxu0 0
        %789 = vmatpush1.bf16.msra.mxu0 0
        %790 = vmatprep.subr.bf16.mxu0 0
        %791 = vmatpush1.bf16.msra.mxu0 0
        %792 = vmatprep.subr.bf16.mxu0 0
        %793 = vmatpush1.bf16.msra.mxu0 0
        %794 = vmatprep.subr.bf16.mxu0 0
        %795 = vmatpush1.bf16.msra.mxu0 0
        %796 = vmatprep.subr.bf16.mxu0 0
        %797 = vmatpush1.bf16.msra.mxu0 0
        %798 = vmatprep.subr.bf16.mxu0 0
        %799 = vmatpush1.bf16.msra.mxu0 0
        %800 = vmatprep.subr.bf16.mxu0 0
        %801 = vmatpush1.bf16.msra.mxu0 0
        %802 = vmatprep.subr.bf16.mxu0 0
        %803 = vmatpush1.bf16.msra.mxu0 0
        %804 = vmatprep.subr.bf16.mxu0 0
        %805 = vmatpush1.bf16.msra.mxu0 0
        %806 = vmatprep.subr.bf16.mxu0 0
        %807 = vmatpush1.bf16.msra.mxu0 0
        %808 = vmatprep.mubr.bf16.mxu0 0
        %809 = vmatmul.mubr.bf16.gmra.mrb[0].mxu0 %v771
        %v810 = vpop.f32.mrb[0].mxu0
        %v811 = vadd.f32 0.0, %v810
        %v812 = vpop.f32.mrb[0].mxu0
        %v813 = vpop.f32.mrb[0].mxu0
        %v814 = vpop.f32.mrb[0].mxu0
        %815 = vdwg.mxu0
        %v816 = vadd.f32 %v654, %v811
        %817 = vrot.lane.b32.xlu0 %v343, 104
        %v818 = vpop.permute.xlu0 %817
        %819 = vrot.lane.b32.xlu0 %v343, 72
        %v820 = vpop.permute.xlu0 %819
        %v822 = vsel %vm347, %v818, 0
        %v825 = vsel %vm347, %v820, 0
        %827 = vmatprep.subr.bf16.mxu0 0
        %828 = vmatpush1.bf16.xpose.msra.mxu0 %v825
        %829 = vmatprep.subr.bf16.mxu0 0
        %830 = vmatpush1.bf16.xpose.msra.mxu0 0
        %831 = vmatprep.subr.bf16.mxu0 0
        %832 = vmatpush1.bf16.xpose.msra.mxu0 0
        %833 = vmatprep.subr.bf16.mxu0 0
        %834 = vmatpush1.bf16.xpose.msra.mxu0 0
        %835 = vmatprep.subr.bf16.mxu0 0
        %836 = vmatpush1.bf16.xpose.msra.mxu0 0
        %837 = vmatprep.subr.bf16.mxu0 0
        %838 = vmatpush1.bf16.xpose.msra.mxu0 0
        %839 = vmatprep.subr.bf16.mxu0 0
        %840 = vmatpush1.bf16.xpose.msra.mxu0 0
        %841 = vmatprep.subr.bf16.mxu0 0
        %842 = vmatpush1.bf16.xpose.msra.mxu0 0
        %843 = vmatprep.subr.bf16.mxu0 0
        %844 = vmatpush1.bf16.xpose.msra.mxu0 0
        %845 = vmatprep.subr.bf16.mxu0 0
        %846 = vmatpush1.bf16.xpose.msra.mxu0 0
        %847 = vmatprep.subr.bf16.mxu0 0
        %848 = vmatpush1.bf16.xpose.msra.mxu0 0
        %849 = vmatprep.subr.bf16.mxu0 0
        %850 = vmatpush1.bf16.xpose.msra.mxu0 0
        %851 = vmatprep.subr.bf16.mxu0 0
        %852 = vmatpush1.bf16.xpose.msra.mxu0 0
        %853 = vmatprep.subr.bf16.mxu0 0
        %854 = vmatpush1.bf16.xpose.msra.mxu0 0
        %855 = vmatprep.subr.bf16.mxu0 0
        %856 = vmatpush1.bf16.xpose.msra.mxu0 0
        %857 = vmatprep.subr.bf16.mxu0 0
        %858 = vmatpush1.bf16.xpose.msra.mxu0 0
        %859 = vmatprep.mubr.bf16.mxu0 0
        %860 = vmatmul.mubr.bf16.gmra.mrb[0].mxu0 %v822
        %v861 = vpop.f32.mrb[0].mxu0
        %v862 = vadd.f32 0.0, %v861
        %v863 = vpop.f32.mrb[0].mxu0
        %v864 = vpop.f32.mrb[0].mxu0
        %v865 = vpop.f32.mrb[0].mxu0
        %866 = vdwg.mxu0
        %v867 = vsel %vm347, %v862, -inf
        %868 = vmax.xlane.f32.xlu0 %v867
        %v869 = vpop.xlane.xlu0 %868
        %v870 = vsub.f32 %v862, %v869
        %v871 = vmul.f32 %v870, 1.442695
        %v872 = vpow.pop %v871
        %v873 = vsel %vm347, %v872, 0.0
        %874 = vadd.xlane.f32.xlu0 %v873
        %v875 = vpop.xlane.xlu0 %874
        %v876 = vrcp.pop %v875
        %v877 = vmul.f32 %v872, %v876
        %v878 = vpack.c.bf16 %v877, %v877
        %879 = vrot.lane.b32.xlu0 %v343, 40
        %v880 = vpop.permute.xlu0 %879
        %v882 = vsel %vm347, %v878, 0
        %v885 = vsel %vm411, %v880, 0
        %887 = vmatprep.subr.bf16.mxu0 0
        %888 = vmatpush1.bf16.msra.mxu0 %v885
        %889 = vmatprep.subr.bf16.mxu0 0
        %890 = vmatpush1.bf16.msra.mxu0 0
        %891 = vmatprep.subr.bf16.mxu0 0
        %892 = vmatpush1.bf16.msra.mxu0 0
        %893 = vmatprep.subr.bf16.mxu0 0
        %894 = vmatpush1.bf16.msra.mxu0 0
        %895 = vmatprep.subr.bf16.mxu0 0
        %896 = vmatpush1.bf16.msra.mxu0 0
        %897 = vmatprep.subr.bf16.mxu0 0
        %898 = vmatpush1.bf16.msra.mxu0 0
        %899 = vmatprep.subr.bf16.mxu0 0
        %900 = vmatpush1.bf16.msra.mxu0 0
        %901 = vmatprep.subr.bf16.mxu0 0
        %902 = vmatpush1.bf16.msra.mxu0 0
        %903 = vmatprep.subr.bf16.mxu0 0
        %904 = vmatpush1.bf16.msra.mxu0 0
        %905 = vmatprep.subr.bf16.mxu0 0
        %906 = vmatpush1.bf16.msra.mxu0 0
        %907 = vmatprep.subr.bf16.mxu0 0
        %908 = vmatpush1.bf16.msra.mxu0 0
        %909 = vmatprep.subr.bf16.mxu0 0
        %910 = vmatpush1.bf16.msra.mxu0 0
        %911 = vmatprep.subr.bf16.mxu0 0
        %912 = vmatpush1.bf16.msra.mxu0 0
        %913 = vmatprep.subr.bf16.mxu0 0
        %914 = vmatpush1.bf16.msra.mxu0 0
        %915 = vmatprep.subr.bf16.mxu0 0
        %916 = vmatpush1.bf16.msra.mxu0 0
        %917 = vmatprep.subr.bf16.mxu0 0
        %918 = vmatpush1.bf16.msra.mxu0 0
        %919 = vmatprep.mubr.bf16.mxu0 0
        %920 = vmatmul.mubr.bf16.gmra.mrb[0].mxu0 %v882
        %v921 = vpop.f32.mrb[0].mxu0
        %v922 = vadd.f32 0.0, %v921
        %v923 = vpop.f32.mrb[0].mxu0
        %v924 = vpop.f32.mrb[0].mxu0
        %v925 = vpop.f32.mrb[0].mxu0
        %926 = vdwg.mxu0
        %v927 = vpack.c.bf16 %v922, %v922
        %v929 = vsel %vm347, %v927, 0
        %v932 = vsel %vm411, %v342, 0
        %934 = vmatprep.subr.bf16.mxu0 0
        %935 = vmatpush1.bf16.msra.mxu0 %v932
        %936 = vmatprep.subr.bf16.mxu0 0
        %937 = vmatpush1.bf16.msra.mxu0 0
        %938 = vmatprep.subr.bf16.mxu0 0
        %939 = vmatpush1.bf16.msra.mxu0 0
        %940 = vmatprep.subr.bf16.mxu0 0
        %941 = vmatpush1.bf16.msra.mxu0 0
        %942 = vmatprep.subr.bf16.mxu0 0
        %943 = vmatpush1.bf16.msra.mxu0 0
        %944 = vmatprep.subr.bf16.mxu0 0
        %945 = vmatpush1.bf16.msra.mxu0 0
        %946 = vmatprep.subr.bf16.mxu0 0
        %947 = vmatpush1.bf16.msra.mxu0 0
        %948 = vmatprep.subr.bf16.mxu0 0
        %949 = vmatpush1.bf16.msra.mxu0 0
        %950 = vmatprep.subr.bf16.mxu0 0
        %951 = vmatpush1.bf16.msra.mxu0 0
        %952 = vmatprep.subr.bf16.mxu0 0
        %953 = vmatpush1.bf16.msra.mxu0 0
        %954 = vmatprep.subr.bf16.mxu0 0
        %955 = vmatpush1.bf16.msra.mxu0 0
        %956 = vmatprep.subr.bf16.mxu0 0
        %957 = vmatpush1.bf16.msra.mxu0 0
        %958 = vmatprep.subr.bf16.mxu0 0
        %959 = vmatpush1.bf16.msra.mxu0 0
        %960 = vmatprep.subr.bf16.mxu0 0
        %961 = vmatpush1.bf16.msra.mxu0 0
        %962 = vmatprep.subr.bf16.mxu0 0
        %963 = vmatpush1.bf16.msra.mxu0 0
        %964 = vmatprep.subr.bf16.mxu0 0
        %965 = vmatpush1.bf16.msra.mxu0 0
        %966 = vmatprep.mubr.bf16.mxu0 0
        %967 = vmatmul.mubr.bf16.gmra.mrb[0].mxu0 %v929
        %v968 = vpop.f32.mrb[0].mxu0
        %v969 = vadd.f32 0.0, %v968
        %v970 = vpop.f32.mrb[0].mxu0
        %v971 = vpop.f32.mrb[0].mxu0
        %v972 = vpop.f32.mrb[0].mxu0
        %973 = vdwg.mxu0
        %v974 = vadd.f32 %v816, %v969
        %v975 = vld [vmem:[%s4] sm:$0x1]
        %v977 = vlaneseq
        %v978 = vshrl.u32 %v977, 7
        %v979 = vsub.s32 0, %v978
        %v980 = vrot.slane %v975, %v979
        %v982 = vadd.f32 %v974, %v980
        %983 = vst.msk [vmem:[%s268] sm:$0xff] %vm295, %v982
        %s984 = sand.u32 %s141, 1
        %s985 = scalar_lea.sflag [#allocation4], %s984
        %s986 = sand.u32 %s141, 1
        %s987 = smul.addr %s986, 8
        %s988 = scalar_lea.vmem [#allocation8], %s987
        // Predicated region
        $region53: #{tpu_custom_call.1} parent=39 // pred_check
          %p989 = pneg %p151
        $region54: #{tpu_custom_call.1} parent=39 // pred_check_branch
          %991 = sbr.rel (%p989) target = $region56
        $region55: #{tpu_custom_call.1} parent=39 // pred_region
          %s993 = ssub.s32 128, 128
          %994 = vsyncadd %s985, %s993
          %s995 = smul.addr %s23, 128
          %s996 = scalar_lea.hbm %s5, %s995
          %s998 = sshll.u32 %s988, 4
          %s999 = int_to_ptr.vmem [resolvable:$true] %s998
          %1001 = dma.vmem_to_hbm [thread:$0]  %s999, 128, %s996, %s985
        $region56: #{tpu_custom_call.1} parent=39 // pred_fallthru
          _
      $region40: #{tpu_custom_call.1} parent=5 // pred_fallthru
        _
      %p1002 = scmp.le.s32.totalorder 2, %s18
      // Predicated region
      $region57: #{tpu_custom_call.1} parent=5 // pred_check
        %p1003 = pneg %p1002
      $region58: #{tpu_custom_call.1} parent=5 // pred_check_branch
        %1005 = sbr.rel (%p1003) target = $region60
      $region59: #{tpu_custom_call.1} parent=5 // pred_region
        %s1006 = ssub.s32 %s18, 2
        // Predicated region
        $region61: #{tpu_custom_call.1} parent=59 // pred_check
          %p1007 = pneg %p157
        $region62: #{tpu_custom_call.1} parent=59 // pred_check_branch
          %1009 = sbr.rel (%p1007) target = $region64
        $region63: #{tpu_custom_call.1} parent=59 // pred_region
          %s1010 = sand.u32 %s142, 1
          %s1011 = scalar_lea.sflag [#allocation4], %s1010
          %s1012 = sand.u32 %s142, 1
          %s1013 = smul.addr %s1012, 8
          %s1014 = scalar_lea.vmem [#allocation8], %s1013
          %1015 = dma.done %s1011, 128
        $region64: #{tpu_custom_call.1} parent=59 // pred_fallthru
          _
      $region60: #{tpu_custom_call.1} parent=5 // pred_fallthru
        _
    $region6: #{tpu_custom_call.1} parent=1 // loop_footer
      %s22 = sadd.s32 1, %s18
    $region7: #{tpu_custom_call.1} parent=1 // loop_footer_branch
      %17 = sbr.rel target = $region3
    $region8: #{tpu_custom_call.1} parent=1 // loop_exit
      _
    %1016 = vsyncpa [#allocation3], 1
    %s1017 = scalar_lea.sflag [#allocation3], 1
    %1018 = vsyncpa %s1017, 1
    %1019 = vsyncpa [#allocation6], 1
    %1020 = vsyncpa [#allocation4], 1
    %s1021 = scalar_lea.sflag [#allocation4], 1
    %1022 = vsyncpa %s1021, 1

</llo_original>
